<compile_context>
chip_gen: v7x
topology: tpu7x:2x2x1
jax: 0.10.0
libtpu: 0.0.40
codegen_flags: <defaults>
</compile_context>

<pallas_src>
import jax
import jax.numpy as jnp
from jax.experimental import pallas as pl
from jax.experimental.pallas import tpu as pltpu

BN_EPS = 1e-5


def _round_up(v, m):
    return (v + m - 1) // m * m


def _cdiv(a, b):
    return -(-a // b)


# --------------------------------------------------------------------------- #
# Kernel body: one batch tile per grid step, weights resident in VMEM.
# --------------------------------------------------------------------------- #
def residual_block_kernel(x_ref, w0_ref, w1_ref, bias_ref, out_ref):
    d_pad = w0_ref.shape[1]    # padded hidden width  (lane-dense)
    di_pad = w1_ref.shape[1]   # padded output width  (lane-dense)

    # Linear0 (eval-mode BatchNorm folded into W0'/b0') + ReLU, f32 accumulate.
    h = jnp.dot(x_ref[...], w0_ref[...], preferred_element_type=jnp.float32)
    h = jnp.maximum(h + bias_ref[0:1, :d_pad], 0.0)

    # Dropout: identity in eval mode.
    # TODO(synk): training-mode dropout (PRNG mask) not implemented.

    # Linear1, f32 accumulate.
    y = jnp.dot(h.astype(w1_ref.dtype), w1_ref[...],
                preferred_element_type=jnp.float32)
    y = y + bias_ref[1:2, :di_pad]
    out_ref[...] = y.astype(out_ref.dtype)
    # TODO(synk): if d_pad grows >= ~1024 on v7x, chunk the hidden axis with a
    # fori_loop to bound the live f32 `h` slab (not needed at these sizes).


# --------------------------------------------------------------------------- #
# One-time parameter preparation (hoisted out of the per-call forward).
# --------------------------------------------------------------------------- #
def prepare_residual_block_params(gamma, beta, run_mean, run_var,
                                  w0_t, b0, w1_t, b1,
                                  *, compute_dtype=jnp.float32):
    """Fold eval-mode BN into Linear0 and build padded, kernel-ready operands.

    gamma/beta/run_mean/run_var: [1, d_in];
    w0_t: [d_in, d] (Linear0 weight pre-transposed); b0: [1, d];
    w1_t: [d, d_in] (Linear1 weight pre-transposed); b1: [1, d_in].
    Returns (w0_p [d_in, d_pad], w1_p [d_pad, di_pad], bias_slab [8, p]).
    """
    d_in, d = w0_t.shape

    # ---- fold eval-mode BatchNorm1d into Linear0 -----------------------------
    scale = gamma * jax.lax.rsqrt(run_var + BN_EPS)          # [1, d_in]
    shift = beta - run_mean * scale                          # [1, d_in]
    w0_f = w0_t * scale.reshape(d_in, 1)                     # diag(scale) @ W0^T
    b0_f = shift @ w0_t + b0                                 # [1, d]

    # ---- pad only the lane axes (hidden + output); keep d_in rows unpadded ---
    d_pad = _round_up(d, 128)
    di_pad = _round_up(d_in, 128)
    p = max(d_pad, di_pad)

    w0_p = jnp.pad(w0_f.astype(compute_dtype), ((0, 0), (0, d_pad - d)))
    w1_p = jnp.pad(w1_t.astype(compute_dtype),
                   ((0, d_pad - d), (0, di_pad - d_in)))

    bias = jnp.zeros((8, p), jnp.float32)                    # packed bias slab
    bias = bias.at[0, :d].set(b0_f[0].astype(jnp.float32))
    bias = bias.at[1, :d_in].set(b1[0].astype(jnp.float32))
    return w0_p, w1_p, bias


# --------------------------------------------------------------------------- #
# Per-call forward (only pads batch rows + launches the kernel).
# --------------------------------------------------------------------------- #
def residual_block_apply(x, params, *, block_rows=1024):
    w0_p, w1_p, bias = params
    n, d_in = x.shape
    assert w0_p.shape[0] == d_in, "param/input feature-dim mismatch"
    d_pad = w0_p.shape[1]
    di_pad = w1_p.shape[1]
    p = bias.shape[1]
    compute_dtype = w0_p.dtype
    out_dtype = x.dtype

    x_c = x.astype(compute_dtype)
    row_align = 8 * (4 // jnp.dtype(compute_dtype).itemsize)   # 8 f32 / 16 bf16

    # Even split of n into grid steps (bounds padded-row waste); force >=2
    # steps when the batch is large enough so the "parallel" axis spans both
    # v7x TensorCores (no-op on single-TC v5e/v6e).
    n_steps = max(1, _cdiv(n, block_rows))
    if n >= 256 and n_steps < 2:
        n_steps = 2
    tm = _round_up(_cdiv(n, n_steps), row_align)
    n_pad = tm * n_steps

    x_p = jnp.pad(x_c, ((0, n_pad - n), (0, 0)))               # rows only

    out_isz = jnp.dtype(out_dtype).itemsize
    flops = 2 * n_pad * d_in * d_pad + 2 * n_pad * d_pad * di_pad
    bytes_accessed = (x_p.size * x_p.dtype.itemsize
                      + w0_p.size * w0_p.dtype.itemsize
                      + w1_p.size * w1_p.dtype.itemsize
                      + bias.size * bias.dtype.itemsize
                      + n_pad * di_pad * out_isz)

    # VMEM footprint: double-buffered x/out tiles + resident weights (still
    # 2-buffered by the pipeline) + f32 intermediates; 1.5x headroom.
    vmem_est = (2 * tm * d_in * x_p.dtype.itemsize
                + 2 * tm * di_pad * out_isz
                + 2 * (w0_p.size * w0_p.dtype.itemsize
                       + w1_p.size * w1_p.dtype.itemsize
                       + bias.size * bias.dtype.itemsize)
                + tm * d_pad * 4 + tm * di_pad * 4)
    vmem_limit = min(128 << 20, max(32 << 20, int(vmem_est * 1.5)))

    out = pl.pallas_call(
        residual_block_kernel,
        out_shape=jax.ShapeDtypeStruct((n_pad, di_pad), out_dtype),
        grid_spec=pltpu.PrefetchScalarGridSpec(
            num_scalar_prefetch=0,
            grid=(n_steps,),
            in_specs=[
                pl.BlockSpec((tm, d_in), lambda i: (i, 0)),      # x tile (feature axis full-dim, unpadded)
                pl.BlockSpec((d_in, d_pad), lambda i: (0, 0)),   # W0' resident
                pl.BlockSpec((d_pad, di_pad), lambda i: (0, 0)),  # W1^T resident
                pl.BlockSpec((8, p), lambda i: (0, 0)),          # packed biases
            ],
            out_specs=pl.BlockSpec((tm, di_pad), lambda i: (i, 0)),
        ),
        compiler_params=pltpu.CompilerParams(
            dimension_semantics=("parallel",),                   # 2 TCs on v7x
            vmem_limit_bytes=vmem_limit,
        ),
        cost_estimate=pl.CostEstimate(flops=flops, transcendentals=0,
                                      bytes_accessed=bytes_accessed),
    )(x_p, w0_p, w1_p, bias)

    return out[:n, :d_in]


def residual_block(x, gamma, beta, run_mean, run_var, w0_t, b0, w1_t, b1,
                   *, block_rows=1024, compute_dtype=jnp.float32):
    """Convenience wrapper: prep params then apply (prep should be hoisted in
    real use; kept here for a self-contained test)."""
    params = prepare_residual_block_params(
        gamma, beta, run_mean, run_var, w0_t, b0, w1_t, b1,
        compute_dtype=compute_dtype)
    return residual_block_apply(x, params, block_rows=block_rows)


def reference(x, gamma, beta, run_mean, run_var, w0_t, b0, w1_t, b1):
    # Un-fused pure-JAX reference matching the PyTorch eval-mode forward.
    z = (x - run_mean) * jax.lax.rsqrt(run_var + BN_EPS) * gamma + beta
    h = jnp.maximum(z @ w0_t + b0, 0.0)
    return h @ w1_t + b1


if __name__ == "__main__":
    key = jax.random.PRNGKey(0)
    N, D_IN, D = 40, 32, 64          # batch, d_in, d (small, non-divisible N)

    ks = jax.random.split(key, 9)
    x = jax.random.normal(ks[0], (N, D_IN), dtype=jnp.float32)

    # BatchNorm1d params / running stats (deterministic, non-trivial).
    gamma = 1.0 + 0.1 * jax.random.normal(ks[1], (1, D_IN), dtype=jnp.float32)
    beta = 0.1 * jax.random.normal(ks[2], (1, D_IN), dtype=jnp.float32)
    run_mean = 0.05 * jax.random.normal(ks[3], (1, D_IN), dtype=jnp.float32)
    run_var = 1.0 + 0.1 * jnp.abs(jax.random.normal(ks[4], (1, D_IN), dtype=jnp.float32))

    # Linear0: (d_in -> d), Linear1: (d -> d_in); PyTorch-style uniform init.
    lim0 = 1.0 / jnp.sqrt(D_IN)
    w0_t = jax.random.uniform(ks[5], (D_IN, D), jnp.float32, -lim0, lim0)   # W0^T
    b0 = jax.random.uniform(ks[6], (1, D), jnp.float32, -lim0, lim0)
    lim1 = 1.0 / jnp.sqrt(D)
    w1_t = jax.random.uniform(ks[7], (D, D_IN), jnp.float32, -lim1, lim1)   # W1^T
    b1 = jax.random.uniform(ks[8], (1, D_IN), jnp.float32, -lim1, lim1)

    ref = reference(x, gamma, beta, run_mean, run_var, w0_t, b0, w1_t, b1)

    # --- f32 compute path, multi-step batch-tiled grid (small block_rows just
    #     to exercise the even-split tiling + row padding + slice path) -------
    out_f32 = residual_block(x, gamma, beta, run_mean, run_var,
                             w0_t, b0, w1_t, b1,
                             block_rows=16, compute_dtype=jnp.float32)
    out_f32 = jax.block_until_ready(out_f32)
    assert out_f32.shape == (N, D_IN)
    assert jnp.allclose(out_f32, ref, atol=1e-4, rtol=1e-4), \
        "f32 kernel mismatch vs pure-JAX reference"

    # --- bf16 operand path (f32 accumulation), single-step grid -------------
    out_bf16 = residual_block(x, gamma, beta, run_mean, run_var,
                              w0_t, b0, w1_t, b1,
                              block_rows=1024, compute_dtype=jnp.bfloat16)
    out_bf16 = jax.block_until_ready(out_bf16)
    assert out_bf16.shape == (N, D_IN)
    assert jnp.allclose(out_bf16, ref, atol=5e-2, rtol=5e-2), \
        "bf16 kernel mismatch vs pure-JAX reference"

    print("KERNEL_OK")
</pallas_src>

<mosaic_0001>
module attributes {stable_mosaic.version = 11 : i64} {
  func.func @residual_block_kernel(%arg0: i32, %arg1: memref<16x32xf32, #tpu.memory_space<vmem>>, %arg2: memref<32x128xf32, #tpu.memory_space<vmem>>, %arg3: memref<128x128xf32, #tpu.memory_space<vmem>>, %arg4: memref<8x128xf32, #tpu.memory_space<vmem>>, %arg5: memref<16x128xf32, #tpu.memory_space<vmem>>) attributes {dimension_semantics = [#tpu.dimension_semantics<parallel>], iteration_bounds = array<i64: 3>, scalar_prefetch = 0 : i64, scratch_operands = 0 : i64, tpu.core_type = #tpu.core_type<tc>, window_params = [{transform_indices = @transform_0, window_bounds = array<i64: 16, 32>}, {pipeline_mode = #tpu.pipeline_mode<synchronous>, transform_indices = @transform_1, window_bounds = array<i64: 32, 128>}, {pipeline_mode = #tpu.pipeline_mode<synchronous>, transform_indices = @transform_2, window_bounds = array<i64: 128, 128>}, {pipeline_mode = #tpu.pipeline_mode<synchronous>, transform_indices = @transform_3, window_bounds = array<i64: 8, 128>}, {transform_indices = @transform_4, window_bounds = array<i64: 16, 128>}]} {
    %c0 = arith.constant 0 : index
    %c0_0 = arith.constant 0 : index
    %0 = vector.load %arg1[%c0, %c0_0] : memref<16x32xf32, #tpu.memory_space<vmem>>, vector<16x32xf32>
    %c0_1 = arith.constant 0 : index
    %c0_2 = arith.constant 0 : index
    %1 = vector.load %arg2[%c0_1, %c0_2] : memref<32x128xf32, #tpu.memory_space<vmem>>, vector<32x128xf32>
    %cst = arith.constant dense<0.000000e+00> : vector<16x128xf32>
    %2 = tpu.matmul %0, %1, %cst {dimension_numbers = #tpu.dot_dimension_numbers<[1], [0], [0], [1], [0, 0, 1, 1], [], []>} : vector<16x32xf32>, vector<32x128xf32>, vector<16x128xf32> -> vector<16x128xf32>
    %c0_3 = arith.constant 0 : index
    %c0_4 = arith.constant 0 : index
    %3 = vector.load %arg4[%c0_3, %c0_4] : memref<8x128xf32, #tpu.memory_space<vmem>>, vector<1x128xf32>
    %4 = vector.broadcast %3 : vector<1x128xf32> to vector<16x128xf32>
    %5 = arith.addf %2, %4 : vector<16x128xf32>
    %cst_5 = arith.constant 0.000000e+00 : f32
    %6 = vector.broadcast %cst_5 : f32 to vector<16x128xf32>
    %7 = arith.maximumf %5, %6 : vector<16x128xf32>
    %c0_6 = arith.constant 0 : index
    %c0_7 = arith.constant 0 : index
    %8 = vector.load %arg3[%c0_6, %c0_7] : memref<128x128xf32, #tpu.memory_space<vmem>>, vector<128x128xf32>
    %cst_8 = arith.constant dense<0.000000e+00> : vector<16x128xf32>
    %9 = tpu.matmul %7, %8, %cst_8 {dimension_numbers = #tpu.dot_dimension_numbers<[1], [0], [0], [1], [0, 0, 1, 1], [], []>} : vector<16x128xf32>, vector<128x128xf32>, vector<16x128xf32> -> vector<16x128xf32>
    %c1 = arith.constant 1 : index
    %c0_9 = arith.constant 0 : index
    %10 = vector.load %arg4[%c1, %c0_9] : memref<8x128xf32, #tpu.memory_space<vmem>>, vector<1x128xf32>
    %11 = vector.broadcast %10 : vector<1x128xf32> to vector<16x128xf32>
    %12 = arith.addf %9, %11 : vector<16x128xf32>
    %c0_10 = arith.constant 0 : index
    %c0_11 = arith.constant 0 : index
    %13 = vector.load %arg5[%c0_10, %c0_11] : memref<16x128xf32, #tpu.memory_space<vmem>>, vector<16x128xf32>
    tpu.vector_store %arg5[%c0_10, %c0_11], %12 {strides = array<i32>} : memref<16x128xf32, #tpu.memory_space<vmem>>, vector<16x128xf32>,
    return
  }
  func.func @transform_0(%arg0: i32) -> (i32, i32) {
    %c0_i32 = arith.constant 0 : i32
    %c0_i32_0 = arith.constant 0 : i32
    return %arg0, %c0_i32 : i32, i32
  }
  func.func @transform_1(%arg0: i32) -> (i32, i32) {
    %c0_i32 = arith.constant 0 : i32
    %c0_i32_0 = arith.constant 0 : i32
    %c0_i32_1 = arith.constant 0 : i32
    return %c0_i32, %c0_i32_0 : i32, i32
  }
  func.func @transform_2(%arg0: i32) -> (i32, i32) {
    %c0_i32 = arith.constant 0 : i32
    %c0_i32_0 = arith.constant 0 : i32
    %c0_i32_1 = arith.constant 0 : i32
    return %c0_i32, %c0_i32_0 : i32, i32
  }
  func.func @transform_3(%arg0: i32) -> (i32, i32) {
    %c0_i32 = arith.constant 0 : i32
    %c0_i32_0 = arith.constant 0 : i32
    %c0_i32_1 = arith.constant 0 : i32
    return %c0_i32, %c0_i32_0 : i32, i32
  }
  func.func @transform_4(%arg0: i32) -> (i32, i32) {
    %c0_i32 = arith.constant 0 : i32
    %c0_i32_0 = arith.constant 0 : i32
    return %arg0, %c0_i32 : i32, i32
  }
}

</mosaic_0001>

<llo_original>
// kernel: tpu_custom_call.1
$region0: #{tpu_custom_call.1}
  #allocation0 [shape = 'u32[]', space=smem, size = 0x4, offset = 0x4, fixed_abs, tag = 'smem constant byte address 0x4 - core index']
  #allocation1 [shape = 'u32[144,128]{1,0:T(1,128)}', space=vmem, size = 0x12000, scoped, tag = 'internal scratch']
  %s0 = inlined_call_operand.vmem [shape: f32[48,32], index: 0, kind: input, shape index: {}]
  %s1 = inlined_call_operand.vmem [shape: f32[32,128], index: 1, kind: input, shape index: {}]
  %s2 = inlined_call_operand.hbm [shape: f32[128,128], index: 2, kind: input, shape index: {}]
  %s3 = inlined_call_operand.vmem [shape: f32[8,128], index: 3, kind: input, shape index: {}]
  %s4 = inlined_call_operand.hbm [shape: f32[48,128], index: 4, kind: output, shape index: {}]
  %s5 = sld [smem:[#allocation0]]
  $region53: #{tpu_custom_call.1} parent=0
    _
  %s7 = ssub.s32 1, %s5
  %s8 = scalar_select 0, %s7, %s5
  $region1: #{tpu_custom_call.1} parent=0
    #allocation2 [shape = 'u8[65536]{0}', space=vmem, size = 0x10000, scoped, tag = 'input window, operand 2, single buffered']
    #allocation3 [shape = 's32[2]{0}', space=sflag, size = 0x8, scoped, tag = 'scoped memory for tpu_custom_call.1']
    #allocation4 [shape = 's32[2]{0}', space=sflag, size = 0x8, scoped, tag = 'scoped memory for tpu_custom_call.1']
    #allocation5 [shape = 'u8[16384]{0}', space=vmem, size = 0x4000, scoped, tag = 'output window, operand 0']
    %9 = vsyncpa [#allocation3], 0
    %10 = vsyncpa [#allocation4], 0
    %s11 = scalar_lea.sflag [#allocation4], 1
    %12 = vsyncpa %s11, 0
    loop: start=0, step=1, limit=5
    $region2: #{tpu_custom_call.1} parent=1 // loop_pre_header
      _
    $region3: #{tpu_custom_call.1} parent=1 // loop_header
      %s14 = sphi 0, %s18
      %p15 = scmp.ge.s32.totalorder %s14, 5
      %s24 = sphi 0, %s26
      %s27 = sphi 0, %s24
      %s28 = sphi 0, %s27
      %s44 = sphi 0, %s28
      %s48 = sphi 0, %s48
      %s50 = sphi 0, %s48
      %s51 = sphi 0, %s50
      %s65 = sphi 0, %s51
      %s69 = sphi 0, %s69
      %s71 = sphi 0, %s69
      %s72 = sphi 0, %s71
      %s86 = sphi 0, %s72
      %s90 = sphi 0, %s90
      %s92 = sphi 0, %s90
      %s93 = sphi 0, %s92
      %s107 = sphi 0, %s93
      %s113 = sphi 0, %s115
      %s116 = sphi 0, %s113
      %s117 = sphi 0, %s116
      %s133 = sphi 0, %s117
    $region4: #{tpu_custom_call.1} parent=1 // loop_header_branch
      %17 = sbr.rel (%p15) target = $region8
    $region5: #{tpu_custom_call.1} parent=1 // loop_body
      %s19 = ssub.s32 %s14, 1
      %s20 = ssub.s32 %s14, 2
      %s21 = sadd.s32 %s14, 1
      %s22 = ssub.s32 %s14, %s21
      %p23 = scmp.eq.s32.totalorder %s22, 0
      %s25 = sadd.s32 %s24, 1
      %s26 = scalar_select %p23, %s24, %s25
      %p29 = pneg %p23
      %p30 = scmp.eq.s32.totalorder %s14, 2
      %p31 = por %p29, %p30
      %p32 = scmp.ne.s32.totalorder %s24, %s27
      %p33 = scmp.eq.s32.totalorder %s14, 0
      %p34 = por %p32, %p33
      %p35 = scmp.ne.s32.totalorder %s24, %s27
      %p36 = scmp.eq.s32.totalorder %s19, 2
      %p37 = por %p35, %p36
      %p38 = scmp.ne.s32.totalorder %s27, %s28
      %p39 = scmp.eq.s32.totalorder %s19, 0
      %p40 = por %p38, %p39
      %p41 = scmp.ne.s32.totalorder %s27, %s28
      %p42 = scmp.eq.s32.totalorder %s20, 2
      %p43 = por %p41, %p42
      %p45 = scmp.ne.s32.totalorder %s28, %s44
      %p46 = scmp.eq.s32.totalorder %s20, 0
      %p47 = por %p45, %p46
      %s49 = sadd.s32 %s48, 1
      %p52 = scmp.eq.s32.totalorder %s14, 2
      %p53 = scmp.ne.s32.totalorder %s48, %s50
      %p54 = scmp.eq.s32.totalorder %s14, 0
      %p55 = por %p53, %p54
      %p56 = scmp.ne.s32.totalorder %s48, %s50
      %p57 = scmp.eq.s32.totalorder %s19, 2
      %p58 = por %p56, %p57
      %p59 = scmp.ne.s32.totalorder %s50, %s51
      %p60 = scmp.eq.s32.totalorder %s19, 0
      %p61 = por %p59, %p60
      %p62 = scmp.ne.s32.totalorder %s50, %s51
      %p63 = scmp.eq.s32.totalorder %s20, 2
      %p64 = por %p62, %p63
      %p66 = scmp.ne.s32.totalorder %s51, %s65
      %p67 = scmp.eq.s32.totalorder %s20, 0
      %p68 = por %p66, %p67
      %s70 = sadd.s32 %s69, 1
      %p73 = scmp.eq.s32.totalorder %s14, 2
      %p74 = scmp.ne.s32.totalorder %s69, %s71
      %p75 = scmp.eq.s32.totalorder %s14, 0
      %p76 = por %p74, %p75
      %p77 = scmp.ne.s32.totalorder %s69, %s71
      %p78 = scmp.eq.s32.totalorder %s19, 2
      %p79 = por %p77, %p78
      %p80 = scmp.ne.s32.totalorder %s71, %s72
      %p81 = scmp.eq.s32.totalorder %s19, 0
      %p82 = por %p80, %p81
      %p83 = scmp.ne.s32.totalorder %s71, %s72
      %p84 = scmp.eq.s32.totalorder %s20, 2
      %p85 = por %p83, %p84
      %p87 = scmp.ne.s32.totalorder %s72, %s86
      %p88 = scmp.eq.s32.totalorder %s20, 0
      %p89 = por %p87, %p88
      %s91 = sadd.s32 %s90, 1
      %p94 = scmp.eq.s32.totalorder %s14, 2
      %p95 = scmp.ne.s32.totalorder %s90, %s92
      %p96 = scmp.eq.s32.totalorder %s14, 0
      %p97 = por %p95, %p96
      %p98 = scmp.ne.s32.totalorder %s90, %s92
      %p99 = scmp.eq.s32.totalorder %s19, 2
      %p100 = por %p98, %p99
      %p101 = scmp.ne.s32.totalorder %s92, %s93
      %p102 = scmp.eq.s32.totalorder %s19, 0
      %p103 = por %p101, %p102
      %p104 = scmp.ne.s32.totalorder %s92, %s93
      %p105 = scmp.eq.s32.totalorder %s20, 2
      %p106 = por %p104, %p105
      %p108 = scmp.ne.s32.totalorder %s93, %s107
      %p109 = scmp.eq.s32.totalorder %s20, 0
      %p110 = por %p108, %p109
      %s111 = ssub.s32 %s14, %s21
      %p112 = scmp.eq.s32.totalorder %s111, 0
      %s114 = sadd.s32 %s113, 1
      %s115 = scalar_select %p112, %s113, %s114
      %p118 = pneg %p112
      %p119 = scmp.eq.s32.totalorder %s14, 2
      %p120 = por %p118, %p119
      %p121 = scmp.ne.s32.totalorder %s113, %s116
      %p122 = scmp.eq.s32.totalorder %s14, 0
      %p123 = por %p121, %p122
      %p124 = scmp.ne.s32.totalorder %s113, %s116
      %p125 = scmp.eq.s32.totalorder %s19, 2
      %p126 = por %p124, %p125
      %p127 = scmp.ne.s32.totalorder %s116, %s117
      %p128 = scmp.eq.s32.totalorder %s19, 0
      %p129 = por %p127, %p128
      %p130 = scmp.ne.s32.totalorder %s116, %s117
      %p131 = scmp.eq.s32.totalorder %s20, 2
      %p132 = por %p130, %p131
      %p134 = scmp.ne.s32.totalorder %s117, %s133
      %p135 = scmp.eq.s32.totalorder %s20, 0
      %p136 = por %p134, %p135
      %p137 = scmp.le.s32.totalorder 1, %s14
      %p138 = scmp.lt.s32.totalorder %s14, 4
      %p139 = pnand %p137, %p138
      %p140 = pneg %p139
      // Predicated region
      $region9: #{tpu_custom_call.1} parent=5 // pred_check
        _
      $region10: #{tpu_custom_call.1} parent=5 // pred_check_branch
        %142 = sbr.rel (%p139) target = $region12
      $region11: #{tpu_custom_call.1} parent=5 // pred_region
        %s143 = ssub.s32 %s14, 1
        // Predicated region
        $region13: #{tpu_custom_call.1} parent=11 // pred_check
          %p144 = pneg %p61
        $region14: #{tpu_custom_call.1} parent=11 // pred_check_branch
          %146 = sbr.rel (%p144) target = $region16
        $region15: #{tpu_custom_call.1} parent=11 // pred_region
          _
        $region16: #{tpu_custom_call.1} parent=11 // pred_fallthru
          _
        // Predicated region
        $region17: #{tpu_custom_call.1} parent=11 // pred_check
          %p147 = pneg %p82
        $region18: #{tpu_custom_call.1} parent=11 // pred_check_branch
          %149 = sbr.rel (%p147) target = $region20
        $region19: #{tpu_custom_call.1} parent=11 // pred_region
          %s151 = ssub.s32 2048, 2048
          %152 = vsyncadd [#allocation3], %s151
          %s153 = sshll.u32 [#allocation2], 4
          %s154 = int_to_ptr.vmem [resolvable:$true] %s153
          %159 = dma.hbm_to_vmem [thread:$0]  %s2, 2048, %s154, [#allocation3], 128, 128, 8
        $region20: #{tpu_custom_call.1} parent=11 // pred_fallthru
          _
        // Predicated region
        $region21: #{tpu_custom_call.1} parent=11 // pred_check
          %p160 = pneg %p103
        $region22: #{tpu_custom_call.1} parent=11 // pred_check_branch
          %162 = sbr.rel (%p160) target = $region24
        $region23: #{tpu_custom_call.1} parent=11 // pred_region
          _
        $region24: #{tpu_custom_call.1} parent=11 // pred_fallthru
          _
      $region12: #{tpu_custom_call.1} parent=5 // pred_fallthru
        _
      %p163 = scmp.lt.s32.totalorder %s14, 3
      // Predicated region
      $region25: #{tpu_custom_call.1} parent=5 // pred_check
        %p164 = pneg %p163
      $region26: #{tpu_custom_call.1} parent=5 // pred_check_branch
        %166 = sbr.rel (%p164) target = $region28
      $region27: #{tpu_custom_call.1} parent=5 // pred_region
        // Predicated region
        $region29: #{tpu_custom_call.1} parent=27 // pred_check
          %p167 = pneg %p34
        $region30: #{tpu_custom_call.1} parent=27 // pred_check_branch
          %169 = sbr.rel (%p167) target = $region32
        $region31: #{tpu_custom_call.1} parent=27 // pred_region
          %s170 = smul.u32 2, %s14
          %p171 = scmp.lt.s32.totalorder %s170, 5
          %s172 = scalar_select %p171, %s170, 5
          %s173 = smul.addr %s172, 8
          %s174 = scalar_lea.vmem %s0, %s173
          %s175 = smul.u32 2, %s14
        $region32: #{tpu_custom_call.1} parent=27 // pred_fallthru
          _
      $region28: #{tpu_custom_call.1} parent=5 // pred_fallthru
        _
      %p176 = scmp.le.s32.totalorder 1, %s14
      %p177 = scmp.lt.s32.totalorder %s14, 4
      %p178 = pnand %p176, %p177
      %p179 = pneg %p178
      // Predicated region
      $region33: #{tpu_custom_call.1} parent=5 // pred_check
        _
      $region34: #{tpu_custom_call.1} parent=5 // pred_check_branch
        %181 = sbr.rel (%p178) target = $region36
      $region35: #{tpu_custom_call.1} parent=5 // pred_region
        %s182 = ssub.s32 %s14, 1
        // Predicated region
        $region37: #{tpu_custom_call.1} parent=35 // pred_check
          %p183 = pneg %p82
        $region38: #{tpu_custom_call.1} parent=35 // pred_check_branch
          %185 = sbr.rel (%p183) target = $region40
        $region39: #{tpu_custom_call.1} parent=35 // pred_region
          %186 = dma.done [#allocation3], 2048
        $region40: #{tpu_custom_call.1} parent=35 // pred_fallthru
          _
        %s187 = smul.u32 2, %s19
        %p188 = scmp.lt.s32.totalorder %s187, 5
        %s189 = scalar_select %p188, %s187, 5
        %s190 = smul.addr %s189, 8
        %s191 = scalar_lea.vmem %s0, %s190
        %p192 = pneg %p40
        %p193 = pneg %p37
        %p194 = pneg %p61
        %p195 = pneg %p58
        %p196 = pneg %p82
        %p197 = pneg %p79
        %p198 = pneg %p103
        %p199 = pneg %p100
        %p200 = pneg %p129
        %p201 = pneg %p126
        %s202 = sand.u32 %s116, 1
        %s203 = scalar_lea.sflag [#allocation4], %s202
        %s204 = sand.u32 %s116, 1
        %s205 = smul.addr %s204, 16
        %s206 = scalar_lea.vmem [#allocation5], %s205
        %s207 = smul.u32 2, %s19
        %p208 = scmp.lt.s32.totalorder %s207, 5
        %s209 = scalar_select %p208, %s207, 5
        %s210 = smul.addr %s209, 8
        %s211 = scalar_lea.vmem %s0, %s210
        %s212 = smul.u32 2, %s19
        %s213 = smul.u32 2, %s19
        %v214 = vld [vmem:[%s211] sm:$0xff]
        %v215 = vld [vmem:[%s211 + $0x8] sm:$0xff]
        %v216 = vld [vmem:[%s1] sm:$0xff]
        %v217 = vld [vmem:[%s1 + $0x8] sm:$0xff]
        %v218 = vld [vmem:[%s1 + $0x10] sm:$0xff]
        %v219 = vld [vmem:[%s1 + $0x18] sm:$0xff]
        %v220 = vld [vmem:[%s3] sm:$0x1]
        %v221 = vlaneseq
        %v222 = vshrl.u32 %v221, 7
        %v223 = vsub.s32 0, %v222
        %v224 = vrot.slane %v220, %v223
        %vm225 = vcmask 261120
        %v227 = vsel %vm225, %v214, 0
        %v230 = vsel %vm225, %v215, 0
        %232 = vmatprep.subr.mxu0 0.0
        %233 = vmatpush1.msra.mxu0 %v216
        %234 = vmatprep.subr.mxu0 0.0
        %235 = vmatpush1.msra.mxu0 %v217
        %236 = vmatprep.subr.mxu0 0.0
        %237 = vmatpush1.msra.mxu0 %v218
        %238 = vmatprep.subr.mxu0 0.0
        %239 = vmatpush1.msra.mxu0 %v219
        %240 = vmatprep.subr.mxu0 0.0
        %241 = vmatpush1.msra.mxu0 0.0
        %242 = vmatprep.subr.mxu0 0.0
        %243 = vmatpush1.msra.mxu0 0.0
        %244 = vmatprep.subr.mxu0 0.0
        %245 = vmatpush1.msra.mxu0 0.0
        %246 = vmatprep.subr.mxu0 0.0
        %247 = vmatpush1.msra.mxu0 0.0
        %248 = vmatprep.subr.mxu0 0.0
        %249 = vmatpush1.msra.mxu0 0.0
        %250 = vmatprep.subr.mxu0 0.0
        %251 = vmatpush1.msra.mxu0 0.0
        %252 = vmatprep.subr.mxu0 0.0
        %253 = vmatpush1.msra.mxu0 0.0
        %254 = vmatprep.subr.mxu0 0.0
        %255 = vmatpush1.msra.mxu0 0.0
        %256 = vmatprep.subr.mxu0 0.0
        %257 = vmatpush1.msra.mxu0 0.0
        %258 = vmatprep.subr.mxu0 0.0
        %259 = vmatpush1.msra.mxu0 0.0
        %260 = vmatprep.subr.mxu0 0.0
        %261 = vmatpush1.msra.mxu0 0.0
        %262 = vmatprep.subr.mxu0 0.0
        %263 = vmatpush1.msra.mxu0 0.0
        %264 = vmatprep.subr.mxu0 0.0
        %265 = vmatpush1.msra.mxu0 0.0
        %266 = vmatprep.subr.mxu0 0.0
        %267 = vmatpush1.msra.mxu0 0.0
        %268 = vmatprep.subr.mxu0 0.0
        %269 = vmatpush1.msra.mxu0 0.0
        %270 = vmatprep.subr.mxu0 0.0
        %271 = vmatpush1.msra.mxu0 0.0
        %272 = vmatprep.subr.mxu0 0.0
        %273 = vmatpush1.msra.mxu0 0.0
        %274 = vmatprep.subr.mxu0 0.0
        %275 = vmatpush1.msra.mxu0 0.0
        %276 = vmatprep.subr.mxu0 0.0
        %277 = vmatpush1.msra.mxu0 0.0
        %278 = vmatprep.subr.mxu0 0.0
        %279 = vmatpush1.msra.mxu0 0.0
        %280 = vmatprep.subr.mxu0 0.0
        %281 = vmatpush1.msra.mxu0 0.0
        %282 = vmatprep.subr.mxu0 0.0
        %283 = vmatpush1.msra.mxu0 0.0
        %284 = vmatprep.subr.mxu0 0.0
        %285 = vmatpush1.msra.mxu0 0.0
        %286 = vmatprep.subr.mxu0 0.0
        %287 = vmatpush1.msra.mxu0 0.0
        %288 = vmatprep.subr.mxu0 0.0
        %289 = vmatpush1.msra.mxu0 0.0
        %290 = vmatprep.subr.mxu0 0.0
        %291 = vmatpush1.msra.mxu0 0.0
        %292 = vmatprep.subr.mxu0 0.0
        %293 = vmatpush1.msra.mxu0 0.0
        %294 = vmatprep.subr.mxu0 0.0
        %295 = vmatpush1.msra.mxu0 0.0
        %296 = vmatprep.mubr.f32.mxu0 0.0
        %297 = vmatmul.mubr.f32.gmra.mrb[0].mxu0 %v227
        %v298 = vpop.f32.mrb[0].mxu0
        %v299 = vadd.f32 %v224, %v298
        %v300 = vpop.f32.mrb[0].mxu0
        %301 = vmatprep.mubr.f32.mxu0 0.0
        %302 = vmatmul.mubr.f32.gmra.mrb[0].mxu0 %v230
        %v303 = vpop.f32.mrb[0].mxu0
        %v304 = vadd.f32 %v224, %v303
        %v305 = vpop.f32.mrb[0].mxu0
        %306 = vdwg.mxu0
        %v307 = vmax.f32 %v299, 0.0
        %v308 = vmax.f32 %v304, 0.0
        %v309 = vld [vmem:[#allocation2] sm:$0xff]
        %v310 = vld [vmem:[#allocation2 + $0x8] sm:$0xff]
        %v311 = vld [vmem:[#allocation2 + $0x10] sm:$0xff]
        %v312 = vld [vmem:[#allocation2 + $0x18] sm:$0xff]
        %v313 = vld [vmem:[#allocation2 + $0x20] sm:$0xff]
        %v314 = vld [vmem:[#allocation2 + $0x28] sm:$0xff]
        %v315 = vld [vmem:[#allocation2 + $0x30] sm:$0xff]
        %v316 = vld [vmem:[#allocation2 + $0x38] sm:$0xff]
        %v317 = vld [vmem:[#allocation2 + $0x40] sm:$0xff]
        %v318 = vld [vmem:[#allocation2 + $0x48] sm:$0xff]
        %v319 = vld [vmem:[#allocation2 + $0x50] sm:$0xff]
        %v320 = vld [vmem:[#allocation2 + $0x58] sm:$0xff]
        %v321 = vld [vmem:[#allocation2 + $0x60] sm:$0xff]
        %v322 = vld [vmem:[#allocation2 + $0x68] sm:$0xff]
        %v323 = vld [vmem:[#allocation2 + $0x70] sm:$0xff]
        %v324 = vld [vmem:[#allocation2 + $0x78] sm:$0xff]
        %v325 = vld [vmem:[%s3 + $0x1] sm:$0x1]
        %v326 = vlaneseq
        %v327 = vshrl.u32 %v326, 7
        %v328 = vsub.s32 0, %v327
        %v329 = vrot.slane %v325, %v328
        %330 = vmatprep.subr.mxu0 0.0
        %331 = vmatpush1.msra.mxu0 %v309
        %332 = vmatprep.subr.mxu0 0.0
        %333 = vmatpush1.msra.mxu0 %v310
        %334 = vmatprep.subr.mxu0 0.0
        %335 = vmatpush1.msra.mxu0 %v311
        %336 = vmatprep.subr.mxu0 0.0
        %337 = vmatpush1.msra.mxu0 %v312
        %338 = vmatprep.subr.mxu0 0.0
        %339 = vmatpush1.msra.mxu0 %v313
        %340 = vmatprep.subr.mxu0 0.0
        %341 = vmatpush1.msra.mxu0 %v314
        %342 = vmatprep.subr.mxu0 0.0
        %343 = vmatpush1.msra.mxu0 %v315
        %344 = vmatprep.subr.mxu0 0.0
        %345 = vmatpush1.msra.mxu0 %v316
        %346 = vmatprep.subr.mxu0 0.0
        %347 = vmatpush1.msra.mxu0 %v317
        %348 = vmatprep.subr.mxu0 0.0
        %349 = vmatpush1.msra.mxu0 %v318
        %350 = vmatprep.subr.mxu0 0.0
        %351 = vmatpush1.msra.mxu0 %v319
        %352 = vmatprep.subr.mxu0 0.0
        %353 = vmatpush1.msra.mxu0 %v320
        %354 = vmatprep.subr.mxu0 0.0
        %355 = vmatpush1.msra.mxu0 %v321
        %356 = vmatprep.subr.mxu0 0.0
        %357 = vmatpush1.msra.mxu0 %v322
        %358 = vmatprep.subr.mxu0 0.0
        %359 = vmatpush1.msra.mxu0 %v323
        %360 = vmatprep.subr.mxu0 0.0
        %361 = vmatpush1.msra.mxu0 %v324
        %362 = vmatprep.subr.mxu0 0.0
        %363 = vmatpush1.msra.mxu0 0.0
        %364 = vmatprep.subr.mxu0 0.0
        %365 = vmatpush1.msra.mxu0 0.0
        %366 = vmatprep.subr.mxu0 0.0
        %367 = vmatpush1.msra.mxu0 0.0
        %368 = vmatprep.subr.mxu0 0.0
        %369 = vmatpush1.msra.mxu0 0.0
        %370 = vmatprep.subr.mxu0 0.0
        %371 = vmatpush1.msra.mxu0 0.0
        %372 = vmatprep.subr.mxu0 0.0
        %373 = vmatpush1.msra.mxu0 0.0
        %374 = vmatprep.subr.mxu0 0.0
        %375 = vmatpush1.msra.mxu0 0.0
        %376 = vmatprep.subr.mxu0 0.0
        %377 = vmatpush1.msra.mxu0 0.0
        %378 = vmatprep.subr.mxu0 0.0
        %379 = vmatpush1.msra.mxu0 0.0
        %380 = vmatprep.subr.mxu0 0.0
        %381 = vmatpush1.msra.mxu0 0.0
        %382 = vmatprep.subr.mxu0 0.0
        %383 = vmatpush1.msra.mxu0 0.0
        %384 = vmatprep.subr.mxu0 0.0
        %385 = vmatpush1.msra.mxu0 0.0
        %386 = vmatprep.subr.mxu0 0.0
        %387 = vmatpush1.msra.mxu0 0.0
        %388 = vmatprep.subr.mxu0 0.0
        %389 = vmatpush1.msra.mxu0 0.0
        %390 = vmatprep.subr.mxu0 0.0
        %391 = vmatpush1.msra.mxu0 0.0
        %392 = vmatprep.subr.mxu0 0.0
        %393 = vmatpush1.msra.mxu0 0.0
        %394 = vmatprep.mubr.f32.mxu0 0.0
        %395 = vmatmul.mubr.f32.gmra.mrb[0].mxu0 %v307
        %v396 = vpop.f32.mrb[0].mxu0
        %v397 = vadd.f32 %v329, %v396
        %v398 = vpop.f32.mrb[0].mxu0
        %399 = vmatprep.mubr.f32.mxu0 0.0
        %400 = vmatmul.mubr.f32.gmra.mrb[0].mxu0 %v308
        %v401 = vpop.f32.mrb[0].mxu0
        %v402 = vadd.f32 %v329, %v401
        %v403 = vpop.f32.mrb[0].mxu0
        %404 = vdwg.mxu0
        %405 = vst [vmem:[%s206] sm:$0xff] %v397
        %406 = vst [vmem:[%s206 + $0x8] sm:$0xff] %v402
        %s407 = sand.u32 %s116, 1
        %s408 = scalar_lea.sflag [#allocation4], %s407
        %s409 = sand.u32 %s116, 1
        %s410 = smul.addr %s409, 16
        %s411 = scalar_lea.vmem [#allocation5], %s410
        // Predicated region
        $region41: #{tpu_custom_call.1} parent=35 // pred_check
          %p412 = pneg %p126
        $region42: #{tpu_custom_call.1} parent=35 // pred_check_branch
          %414 = sbr.rel (%p412) target = $region44
        $region43: #{tpu_custom_call.1} parent=35 // pred_region
          %s415 = smul.u32 2, %s19
          %s417 = ssub.s32 256, 256
          %418 = vsyncadd %s408, %s417
          %s419 = smul.addr %s415, 128
          %s420 = scalar_lea.hbm %s4, %s419
          %s421 = sshll.u32 %s411, 4
          %s422 = int_to_ptr.vmem [resolvable:$true] %s421
          %427 = dma.vmem_to_hbm [thread:$0]  %s422, 256, %s420, %s408, 128, 128, 8
        $region44: #{tpu_custom_call.1} parent=35 // pred_fallthru
          _
      $region36: #{tpu_custom_call.1} parent=5 // pred_fallthru
        _
      %p428 = scmp.le.s32.totalorder 2, %s14
      // Predicated region
      $region45: #{tpu_custom_call.1} parent=5 // pred_check
        %p429 = pneg %p428
      $region46: #{tpu_custom_call.1} parent=5 // pred_check_branch
        %431 = sbr.rel (%p429) target = $region48
      $region47: #{tpu_custom_call.1} parent=5 // pred_region
        %s432 = ssub.s32 %s14, 2
        // Predicated region
        $region49: #{tpu_custom_call.1} parent=47 // pred_check
          %p433 = pneg %p132
        $region50: #{tpu_custom_call.1} parent=47 // pred_check_branch
          %435 = sbr.rel (%p433) target = $region52
        $region51: #{tpu_custom_call.1} parent=47 // pred_region
          %s436 = sand.u32 %s117, 1
          %s437 = scalar_lea.sflag [#allocation4], %s436
          %s438 = sand.u32 %s117, 1
          %s439 = smul.addr %s438, 16
          %s440 = scalar_lea.vmem [#allocation5], %s439
          %441 = dma.done %s437, 256
        $region52: #{tpu_custom_call.1} parent=47 // pred_fallthru
          _
      $region48: #{tpu_custom_call.1} parent=5 // pred_fallthru
        _
    $region6: #{tpu_custom_call.1} parent=1 // loop_footer
      %s18 = sadd.s32 1, %s14
    $region7: #{tpu_custom_call.1} parent=1 // loop_footer_branch
      %13 = sbr.rel target = $region3
    $region8: #{tpu_custom_call.1} parent=1 // loop_exit
      _
    %442 = vsyncpa [#allocation3], 1
    %s443 = scalar_lea.sflag [#allocation3], 1
    %444 = vsyncpa %s443, 1
    %445 = vsyncpa [#allocation4], 1
    %s446 = scalar_lea.sflag [#allocation4], 1
    %447 = vsyncpa %s446, 1

</llo_original>
